<compile_context>
chip_gen: v6e
topology: v6e:2x2x1
jax: 0.10.0
libtpu: 0.0.40
codegen_flags: <defaults>
</compile_context>

<pallas_src>
import functools

import jax
import jax.numpy as jnp
from jax.experimental import pallas as pl
from jax.experimental.pallas import tpu as pltpu


def _round_up(a, b):
    return (a + b - 1) // b * b


def _mlp_kernel(x_ref, wgu_ref, wd_ref, o_ref):
    # x_ref:   (tm, H)     tile of flattened tokens (f32 in VMEM)
    # wgu_ref: (H, 2I)     [gate | up] fused weight, [in, out], bf16, resident
    # wd_ref:  (I, H)      down_proj weight, [in, out], bf16, resident
    # o_ref:   (tm, H)
    inter = wd_ref.shape[0]

    # bf16 operands -> full-rate MXU; f32 accumulation via preferred_element_type.
    x = x_ref[...].astype(wgu_ref.dtype)
    gu = jnp.dot(x, wgu_ref[...], preferred_element_type=jnp.float32)  # (tm, 2I) f32

    g = gu[:, :inter]          # lane-aligned slice (I is a multiple of 128)
    u = gu[:, inter:]

    # SwiGLU in f32 on the VPU/EUP (sigmoid goes to the EUP slot).
    h = (g * jax.nn.sigmoid(g)) * u

    o_ref[...] = jnp.dot(
        h.astype(wd_ref.dtype), wd_ref[...], preferred_element_type=jnp.float32
    ).astype(o_ref.dtype)


@functools.partial(jax.jit, static_argnames=("block_m", "compute_dtype"))
def smollm2_mlp(x, w_gate, w_up, w_down, *, block_m=256, compute_dtype=jnp.bfloat16):
    """x: [B, S, H] float32.  w_*: PyTorch-convention [out, in] Linear weights."""
    B, S, H = x.shape
    I = w_gate.shape[0]
    assert w_gate.shape == (I, H) and w_up.shape == (I, H) and w_down.shape == (H, I)

    M = B * S
    x2d = x.reshape(M, H)

    # ---- token-tile sizing ------------------------------------------------------
    bm = min(block_m, _round_up(M, 8))
    # Prefer >= 2 grid steps so the "parallel" token axis can shard across
    # v7x's two TensorCores (harmless elsewhere).
    if _round_up(M, bm) // bm < 2 and M > 8:
        bm = min(bm, _round_up(pl.cdiv(M, 2), 8))
    M_pad = _round_up(M, bm)
    if M_pad != M:
        x2d = jnp.pad(x2d, ((0, M_pad - M), (0, 0)))

    # ---- weight prep (glue, plain JAX): fuse gate+up, transpose to [in,out], bf16 --
    wgu = jnp.concatenate([w_gate.T, w_up.T], axis=1).astype(compute_dtype)  # (H, 2I)
    wd_t = w_down.T.astype(compute_dtype)                                    # (I, H)

    grid = (M_pad // bm,)

    flops = 2 * M_pad * (H * (2 * I) + I * H)        # gate+up fused matmul + down matmul
    transcendentals = M_pad * I                      # one sigmoid per gate element
    bytes_accessed = (
        M_pad * H * x2d.dtype.itemsize               # x in
        + wgu.size * wgu.dtype.itemsize              # fused gate/up weight
        + wd_t.size * wd_t.dtype.itemsize            # down weight
        + M_pad * H * x.dtype.itemsize               # out
    )

    out2d = pl.pallas_call(
        _mlp_kernel,
        out_shape=jax.ShapeDtypeStruct((M_pad, H), x.dtype),
        grid_spec=pltpu.PrefetchScalarGridSpec(
            num_scalar_prefetch=0,
            grid=grid,
            in_specs=[
                pl.BlockSpec((bm, H), lambda i: (i, 0)),      # x tile
                pl.BlockSpec((H, 2 * I), lambda i: (0, 0)),   # fused gate/up weight (resident)
                pl.BlockSpec((I, H), lambda i: (0, 0)),       # down weight (resident)
            ],
            out_specs=pl.BlockSpec((bm, H), lambda i: (i, 0)),
        ),
        compiler_params=pltpu.CompilerParams(
            dimension_semantics=("parallel",),
            vmem_limit_bytes=48 * 1024 * 1024,
        ),
        cost_estimate=pl.CostEstimate(
            flops=flops,
            transcendentals=transcendentals,
            bytes_accessed=bytes_accessed,
        ),
    )(x2d, wgu, wd_t)

    if M_pad != M:
        out2d = out2d[:M]
    return out2d.reshape(B, S, H)


def _reference(x, w_gate, w_up, w_down, compute_dtype=jnp.float32):
    """Pure-JAX reference; compute_dtype mimics the kernel's bf16 operand rounding."""
    f32 = jnp.float32
    xq = x.astype(compute_dtype).astype(f32)
    wg = w_gate.astype(compute_dtype).astype(f32)
    wu = w_up.astype(compute_dtype).astype(f32)
    wd = w_down.astype(compute_dtype).astype(f32)
    g = jnp.einsum("bsh,ih->bsi", xq, wg)
    u = jnp.einsum("bsh,ih->bsi", xq, wu)
    h = jax.nn.silu(g) * u
    h = h.astype(compute_dtype).astype(f32)
    return jnp.einsum("bsi,hi->bsh", h, wd)


if __name__ == "__main__":
    # Small, constraint-friendly shapes (hidden/intermediate multiples of 128).
    batch, seq = 2, 8
    hidden_size, intermediate_size = 128, 256

    key = jax.random.PRNGKey(0)
    kx, kg, ku, kd = jax.random.split(key, 4)

    x = jax.random.normal(kx, (batch, seq, hidden_size), dtype=jnp.float32)
    # nn.Linear weights are [out_features, in_features]; deterministic init.
    w_gate = jax.random.normal(kg, (intermediate_size, hidden_size), jnp.float32) * 0.02
    w_up = jax.random.normal(ku, (intermediate_size, hidden_size), jnp.float32) * 0.02
    w_down = jax.random.normal(kd, (hidden_size, intermediate_size), jnp.float32) * 0.02

    out = smollm2_mlp(x, w_gate, w_up, w_down)
    out = jax.block_until_ready(out)
    assert out.shape == (batch, seq, hidden_size)

    # Tight check vs a reference using the same bf16 operand rounding (f32 accumulation).
    ref_q = _reference(x, w_gate, w_up, w_down, compute_dtype=jnp.bfloat16)
    assert jnp.allclose(out, ref_q, atol=2e-3, rtol=2e-2), "mismatch vs bf16-rounded reference"

    # Loose sanity check vs the full-f32 module semantics (bf16 weights => small drift).
    ref_f32 = _reference(x, w_gate, w_up, w_down, compute_dtype=jnp.float32)
    max_err = float(jnp.max(jnp.abs(out - ref_f32)))
    assert max_err < 5e-2, f"too far from f32 reference: {max_err}"

    print("KERNEL_OK")
</pallas_src>

<mosaic_0001>
module attributes {stable_mosaic.version = 11 : i64} {
  func.func @_mlp_kernel(%arg0: i32, %arg1: memref<8x128xf32, #tpu.memory_space<vmem>>, %arg2: memref<128x512xbf16, #tpu.memory_space<vmem>>, %arg3: memref<256x128xbf16, #tpu.memory_space<vmem>>, %arg4: memref<8x128xf32, #tpu.memory_space<vmem>>) attributes {dimension_semantics = [#tpu.dimension_semantics<parallel>], iteration_bounds = array<i64: 2>, scalar_prefetch = 0 : i64, scratch_operands = 0 : i64, tpu.core_type = #tpu.core_type<tc>, window_params = [{transform_indices = @transform_0, window_bounds = array<i64: 8, 128>}, {pipeline_mode = #tpu.pipeline_mode<synchronous>, transform_indices = @transform_1, window_bounds = array<i64: 128, 512>}, {pipeline_mode = #tpu.pipeline_mode<synchronous>, transform_indices = @transform_2, window_bounds = array<i64: 256, 128>}, {transform_indices = @transform_3, window_bounds = array<i64: 8, 128>}]} {
    %c0 = arith.constant 0 : index
    %c0_0 = arith.constant 0 : index
    %0 = vector.load %arg1[%c0, %c0_0] : memref<8x128xf32, #tpu.memory_space<vmem>>, vector<8x128xf32>
    %1 = arith.truncf %0 : vector<8x128xf32> to vector<8x128xbf16>
    %c0_1 = arith.constant 0 : index
    %c0_2 = arith.constant 0 : index
    %2 = vector.load %arg2[%c0_1, %c0_2] : memref<128x512xbf16, #tpu.memory_space<vmem>>, vector<128x512xbf16>
    %cst = arith.constant dense<0.000000e+00> : vector<8x512xf32>
    %3 = tpu.matmul %1, %2, %cst {dimension_numbers = #tpu.dot_dimension_numbers<[1], [0], [0], [1], [0, 0, 1, 1], [], []>} : vector<8x128xbf16>, vector<128x512xbf16>, vector<8x512xf32> -> vector<8x512xf32>
    %4 = vector.extract_strided_slice %3 {offsets = [0, 0], sizes = [8, 256], strides = [1, 1]} : vector<8x512xf32> to vector<8x256xf32>
    %5 = vector.extract_strided_slice %3 {offsets = [0, 256], sizes = [8, 256], strides = [1, 1]} : vector<8x512xf32> to vector<8x256xf32>
    %6 = arith.negf %4 : vector<8x256xf32>
    %7 = math.exp %6 : vector<8x256xf32>
    %cst_3 = arith.constant 1.000000e+00 : f32
    %8 = vector.broadcast %cst_3 : f32 to vector<8x256xf32>
    %9 = arith.addf %8, %7 : vector<8x256xf32>
    %10 = arith.divf %8, %9 : vector<8x256xf32>
    %11 = arith.mulf %4, %10 : vector<8x256xf32>
    %12 = arith.mulf %11, %5 : vector<8x256xf32>
    %13 = arith.truncf %12 : vector<8x256xf32> to vector<8x256xbf16>
    %c0_4 = arith.constant 0 : index
    %c0_5 = arith.constant 0 : index
    %14 = vector.load %arg3[%c0_4, %c0_5] : memref<256x128xbf16, #tpu.memory_space<vmem>>, vector<256x128xbf16>
    %cst_6 = arith.constant dense<0.000000e+00> : vector<8x128xf32>
    %15 = tpu.matmul %13, %14, %cst_6 {dimension_numbers = #tpu.dot_dimension_numbers<[1], [0], [0], [1], [0, 0, 1, 1], [], []>} : vector<8x256xbf16>, vector<256x128xbf16>, vector<8x128xf32> -> vector<8x128xf32>
    %c0_7 = arith.constant 0 : index
    %c0_8 = arith.constant 0 : index
    %16 = vector.load %arg4[%c0_7, %c0_8] : memref<8x128xf32, #tpu.memory_space<vmem>>, vector<8x128xf32>
    tpu.vector_store %arg4[%c0_7, %c0_8], %15 {strides = array<i32>} : memref<8x128xf32, #tpu.memory_space<vmem>>, vector<8x128xf32>,
    return
  }
  func.func @transform_0(%arg0: i32) -> (i32, i32) {
    %c0_i32 = arith.constant 0 : i32
    %c0_i32_0 = arith.constant 0 : i32
    return %arg0, %c0_i32 : i32, i32
  }
  func.func @transform_1(%arg0: i32) -> (i32, i32) {
    %c0_i32 = arith.constant 0 : i32
    %c0_i32_0 = arith.constant 0 : i32
    %c0_i32_1 = arith.constant 0 : i32
    return %c0_i32, %c0_i32_0 : i32, i32
  }
  func.func @transform_2(%arg0: i32) -> (i32, i32) {
    %c0_i32 = arith.constant 0 : i32
    %c0_i32_0 = arith.constant 0 : i32
    %c0_i32_1 = arith.constant 0 : i32
    return %c0_i32, %c0_i32_0 : i32, i32
  }
  func.func @transform_3(%arg0: i32) -> (i32, i32) {
    %c0_i32 = arith.constant 0 : i32
    %c0_i32_0 = arith.constant 0 : i32
    return %arg0, %c0_i32 : i32, i32
  }
}

</mosaic_0001>

<llo_original>
// kernel: smollm2_mlp.1
$region0: #{smollm2_mlp.1}
  #allocation0 [shape = 'u32[]', space=smem, size = 0x4, offset = 0x4, fixed_abs, tag = 'smem constant byte address 0x4 - core index']
  #allocation1 [shape = 'u32[144,128]{1,0:T(1,128)}', space=vmem, size = 0x12000, scoped, tag = 'internal scratch']
  %s0 = inlined_call_operand.vmem [shape: f32[16,128], index: 0, kind: input, shape index: {}]
  %s1 = inlined_call_operand.vmem [shape: bf16[128,512], index: 1, kind: input, shape index: {}]
  %s2 = inlined_call_operand.vmem [shape: bf16[256,128], index: 2, kind: input, shape index: {}]
  %s3 = inlined_call_operand.hbm [shape: f32[16,128], index: 3, kind: output, shape index: {}]
  %s4 = sld [smem:[#allocation0]]
  $region45: #{smollm2_mlp.1} parent=0
    _
  %s6 = ssub.s32 1, %s4
  %s7 = scalar_select 0, %s6, %s4
  $region1: #{smollm2_mlp.1} parent=0
    #allocation2 [shape = 'u8[8192]{0}', space=vmem, size = 0x2000, scoped, tag = 'output window, operand 0']
    #allocation3 [shape = 's32[2]{0}', space=sflag, size = 0x8, scoped, tag = 'scoped memory for smollm2_mlp.1']
    %8 = vsyncpa [#allocation3], 0
    %s9 = scalar_lea.sflag [#allocation3], 1
    %10 = vsyncpa %s9, 0
    loop: start=0, step=1, limit=4
    $region2: #{smollm2_mlp.1} parent=1 // loop_pre_header
      _
    $region3: #{smollm2_mlp.1} parent=1 // loop_header
      %s12 = sphi 0, %s16
      %p13 = scmp.ge.s32.totalorder %s12, 4
      %s22 = sphi 0, %s24
      %s25 = sphi 0, %s22
      %s26 = sphi 0, %s25
      %s42 = sphi 0, %s26
      %s46 = sphi 0, %s46
      %s48 = sphi 0, %s46
      %s49 = sphi 0, %s48
      %s63 = sphi 0, %s49
      %s67 = sphi 0, %s67
      %s69 = sphi 0, %s67
      %s70 = sphi 0, %s69
      %s84 = sphi 0, %s70
      %s90 = sphi 0, %s92
      %s93 = sphi 0, %s90
      %s94 = sphi 0, %s93
      %s110 = sphi 0, %s94
    $region4: #{smollm2_mlp.1} parent=1 // loop_header_branch
      %15 = sbr.rel (%p13) target = $region8
    $region5: #{smollm2_mlp.1} parent=1 // loop_body
      %s17 = ssub.s32 %s12, 1
      %s18 = ssub.s32 %s12, 2
      %s19 = sadd.s32 %s12, 1
      %s20 = ssub.s32 %s12, %s19
      %p21 = scmp.eq.s32.totalorder %s20, 0
      %s23 = sadd.s32 %s22, 1
      %s24 = scalar_select %p21, %s22, %s23
      %p27 = pneg %p21
      %p28 = scmp.eq.s32.totalorder %s12, 1
      %p29 = por %p27, %p28
      %p30 = scmp.ne.s32.totalorder %s22, %s25
      %p31 = scmp.eq.s32.totalorder %s12, 0
      %p32 = por %p30, %p31
      %p33 = scmp.ne.s32.totalorder %s22, %s25
      %p34 = scmp.eq.s32.totalorder %s17, 1
      %p35 = por %p33, %p34
      %p36 = scmp.ne.s32.totalorder %s25, %s26
      %p37 = scmp.eq.s32.totalorder %s17, 0
      %p38 = por %p36, %p37
      %p39 = scmp.ne.s32.totalorder %s25, %s26
      %p40 = scmp.eq.s32.totalorder %s18, 1
      %p41 = por %p39, %p40
      %p43 = scmp.ne.s32.totalorder %s26, %s42
      %p44 = scmp.eq.s32.totalorder %s18, 0
      %p45 = por %p43, %p44
      %s47 = sadd.s32 %s46, 1
      %p50 = scmp.eq.s32.totalorder %s12, 1
      %p51 = scmp.ne.s32.totalorder %s46, %s48
      %p52 = scmp.eq.s32.totalorder %s12, 0
      %p53 = por %p51, %p52
      %p54 = scmp.ne.s32.totalorder %s46, %s48
      %p55 = scmp.eq.s32.totalorder %s17, 1
      %p56 = por %p54, %p55
      %p57 = scmp.ne.s32.totalorder %s48, %s49
      %p58 = scmp.eq.s32.totalorder %s17, 0
      %p59 = por %p57, %p58
      %p60 = scmp.ne.s32.totalorder %s48, %s49
      %p61 = scmp.eq.s32.totalorder %s18, 1
      %p62 = por %p60, %p61
      %p64 = scmp.ne.s32.totalorder %s49, %s63
      %p65 = scmp.eq.s32.totalorder %s18, 0
      %p66 = por %p64, %p65
      %s68 = sadd.s32 %s67, 1
      %p71 = scmp.eq.s32.totalorder %s12, 1
      %p72 = scmp.ne.s32.totalorder %s67, %s69
      %p73 = scmp.eq.s32.totalorder %s12, 0
      %p74 = por %p72, %p73
      %p75 = scmp.ne.s32.totalorder %s67, %s69
      %p76 = scmp.eq.s32.totalorder %s17, 1
      %p77 = por %p75, %p76
      %p78 = scmp.ne.s32.totalorder %s69, %s70
      %p79 = scmp.eq.s32.totalorder %s17, 0
      %p80 = por %p78, %p79
      %p81 = scmp.ne.s32.totalorder %s69, %s70
      %p82 = scmp.eq.s32.totalorder %s18, 1
      %p83 = por %p81, %p82
      %p85 = scmp.ne.s32.totalorder %s70, %s84
      %p86 = scmp.eq.s32.totalorder %s18, 0
      %p87 = por %p85, %p86
      %s88 = ssub.s32 %s12, %s19
      %p89 = scmp.eq.s32.totalorder %s88, 0
      %s91 = sadd.s32 %s90, 1
      %s92 = scalar_select %p89, %s90, %s91
      %p95 = pneg %p89
      %p96 = scmp.eq.s32.totalorder %s12, 1
      %p97 = por %p95, %p96
      %p98 = scmp.ne.s32.totalorder %s90, %s93
      %p99 = scmp.eq.s32.totalorder %s12, 0
      %p100 = por %p98, %p99
      %p101 = scmp.ne.s32.totalorder %s90, %s93
      %p102 = scmp.eq.s32.totalorder %s17, 1
      %p103 = por %p101, %p102
      %p104 = scmp.ne.s32.totalorder %s93, %s94
      %p105 = scmp.eq.s32.totalorder %s17, 0
      %p106 = por %p104, %p105
      %p107 = scmp.ne.s32.totalorder %s93, %s94
      %p108 = scmp.eq.s32.totalorder %s18, 1
      %p109 = por %p107, %p108
      %p111 = scmp.ne.s32.totalorder %s94, %s110
      %p112 = scmp.eq.s32.totalorder %s18, 0
      %p113 = por %p111, %p112
      %p114 = scmp.le.s32.totalorder 1, %s12
      %p115 = scmp.lt.s32.totalorder %s12, 3
      %p116 = pnand %p114, %p115
      %p117 = pneg %p116
      // Predicated region
      $region9: #{smollm2_mlp.1} parent=5 // pred_check
        _
      $region10: #{smollm2_mlp.1} parent=5 // pred_check_branch
        %119 = sbr.rel (%p116) target = $region12
      $region11: #{smollm2_mlp.1} parent=5 // pred_region
        %s120 = ssub.s32 %s12, 1
        // Predicated region
        $region13: #{smollm2_mlp.1} parent=11 // pred_check
          %p121 = pneg %p59
        $region14: #{smollm2_mlp.1} parent=11 // pred_check_branch
          %123 = sbr.rel (%p121) target = $region16
        $region15: #{smollm2_mlp.1} parent=11 // pred_region
          _
        $region16: #{smollm2_mlp.1} parent=11 // pred_fallthru
          _
        // Predicated region
        $region17: #{smollm2_mlp.1} parent=11 // pred_check
          %p124 = pneg %p80
        $region18: #{smollm2_mlp.1} parent=11 // pred_check_branch
          %126 = sbr.rel (%p124) target = $region20
        $region19: #{smollm2_mlp.1} parent=11 // pred_region
          _
        $region20: #{smollm2_mlp.1} parent=11 // pred_fallthru
          _
      $region12: #{smollm2_mlp.1} parent=5 // pred_fallthru
        _
      %p127 = scmp.lt.s32.totalorder %s12, 2
      // Predicated region
      $region21: #{smollm2_mlp.1} parent=5 // pred_check
        %p128 = pneg %p127
      $region22: #{smollm2_mlp.1} parent=5 // pred_check_branch
        %130 = sbr.rel (%p128) target = $region24
      $region23: #{smollm2_mlp.1} parent=5 // pred_region
        // Predicated region
        $region25: #{smollm2_mlp.1} parent=23 // pred_check
          %p131 = pneg %p32
        $region26: #{smollm2_mlp.1} parent=23 // pred_check_branch
          %133 = sbr.rel (%p131) target = $region28
        $region27: #{smollm2_mlp.1} parent=23 // pred_region
          %p134 = scmp.lt.s32.totalorder %s12, 1
          %s135 = scalar_select %p134, %s12, 1
          %s136 = smul.addr %s135, 8
          %s137 = scalar_lea.vmem %s0, %s136
        $region28: #{smollm2_mlp.1} parent=23 // pred_fallthru
          _
      $region24: #{smollm2_mlp.1} parent=5 // pred_fallthru
        _
      %p138 = scmp.le.s32.totalorder 1, %s12
      %p139 = scmp.lt.s32.totalorder %s12, 3
      %p140 = pnand %p138, %p139
      %p141 = pneg %p140
      // Predicated region
      $region29: #{smollm2_mlp.1} parent=5 // pred_check
        _
      $region30: #{smollm2_mlp.1} parent=5 // pred_check_branch
        %143 = sbr.rel (%p140) target = $region32
      $region31: #{smollm2_mlp.1} parent=5 // pred_region
        %s144 = ssub.s32 %s12, 1
        %p145 = scmp.lt.s32.totalorder %s17, 1
        %s146 = scalar_select %p145, %s17, 1
        %s147 = smul.addr %s146, 8
        %s148 = scalar_lea.vmem %s0, %s147
        %p149 = pneg %p38
        %p150 = pneg %p35
        %p151 = pneg %p59
        %p152 = pneg %p56
        %p153 = pneg %p80
        %p154 = pneg %p77
        %p155 = pneg %p106
        %p156 = pneg %p103
        %s157 = sand.u32 %s93, 1
        %s158 = scalar_lea.sflag [#allocation3], %s157
        %s159 = sand.u32 %s93, 1
        %s160 = smul.addr %s159, 8
        %s161 = scalar_lea.vmem [#allocation2], %s160
        %p162 = scmp.lt.s32.totalorder %s17, 1
        %s163 = scalar_select %p162, %s17, 1
        %s164 = smul.addr %s163, 8
        %s165 = scalar_lea.vmem %s0, %s164
        %v167 = vld [vmem:[%s165] sm:$0xff]
        %v168 = vpack.c.bf16 %v167, %v167
        %v169 = vld [vmem:[%s1] sm:$0xff]
        %v170 = vld [vmem:[%s1 + $0x8] sm:$0xff]
        %v171 = vld [vmem:[%s1 + $0x10] sm:$0xff]
        %v172 = vld [vmem:[%s1 + $0x18] sm:$0xff]
        %v173 = vld [vmem:[%s1 + $0x20] sm:$0xff]
        %v174 = vld [vmem:[%s1 + $0x28] sm:$0xff]
        %v175 = vld [vmem:[%s1 + $0x30] sm:$0xff]
        %v176 = vld [vmem:[%s1 + $0x38] sm:$0xff]
        %v177 = vld [vmem:[%s1 + $0x40] sm:$0xff]
        %v178 = vld [vmem:[%s1 + $0x48] sm:$0xff]
        %v179 = vld [vmem:[%s1 + $0x50] sm:$0xff]
        %v180 = vld [vmem:[%s1 + $0x58] sm:$0xff]
        %v181 = vld [vmem:[%s1 + $0x60] sm:$0xff]
        %v182 = vld [vmem:[%s1 + $0x68] sm:$0xff]
        %v183 = vld [vmem:[%s1 + $0x70] sm:$0xff]
        %v184 = vld [vmem:[%s1 + $0x78] sm:$0xff]
        %v185 = vld [vmem:[%s1 + $0x80] sm:$0xff]
        %v186 = vld [vmem:[%s1 + $0x88] sm:$0xff]
        %v187 = vld [vmem:[%s1 + $0x90] sm:$0xff]
        %v188 = vld [vmem:[%s1 + $0x98] sm:$0xff]
        %v189 = vld [vmem:[%s1 + $0xa0] sm:$0xff]
        %v190 = vld [vmem:[%s1 + $0xa8] sm:$0xff]
        %v191 = vld [vmem:[%s1 + $0xb0] sm:$0xff]
        %v192 = vld [vmem:[%s1 + $0xb8] sm:$0xff]
        %v193 = vld [vmem:[%s1 + $0xc0] sm:$0xff]
        %v194 = vld [vmem:[%s1 + $0xc8] sm:$0xff]
        %v195 = vld [vmem:[%s1 + $0xd0] sm:$0xff]
        %v196 = vld [vmem:[%s1 + $0xd8] sm:$0xff]
        %v197 = vld [vmem:[%s1 + $0xe0] sm:$0xff]
        %v198 = vld [vmem:[%s1 + $0xe8] sm:$0xff]
        %v199 = vld [vmem:[%s1 + $0xf0] sm:$0xff]
        %v200 = vld [vmem:[%s1 + $0xf8] sm:$0xff]
        %v233 = vunpack.c.l.b16 %v169
        %v234 = vunpack.c.h.b16 %v169
        %v235 = vunpack.c.l.b16 %v170
        %v236 = vunpack.c.h.b16 %v170
        %v237 = vunpack.c.l.b16 %v171
        %v238 = vunpack.c.h.b16 %v171
        %v239 = vunpack.c.l.b16 %v172
        %v240 = vunpack.c.h.b16 %v172
        %v241 = vunpack.c.l.b16 %v173
        %v242 = vunpack.c.h.b16 %v173
        %v243 = vunpack.c.l.b16 %v174
        %v244 = vunpack.c.h.b16 %v174
        %v245 = vunpack.c.l.b16 %v175
        %v246 = vunpack.c.h.b16 %v175
        %v247 = vunpack.c.l.b16 %v176
        %v248 = vunpack.c.h.b16 %v176
        %v249 = vunpack.c.l.b16 %v177
        %v250 = vunpack.c.h.b16 %v177
        %v251 = vunpack.c.l.b16 %v178
        %v252 = vunpack.c.h.b16 %v178
        %v253 = vunpack.c.l.b16 %v179
        %v254 = vunpack.c.h.b16 %v179
        %v255 = vunpack.c.l.b16 %v180
        %v256 = vunpack.c.h.b16 %v180
        %v257 = vunpack.c.l.b16 %v181
        %v258 = vunpack.c.h.b16 %v181
        %v259 = vunpack.c.l.b16 %v182
        %v260 = vunpack.c.h.b16 %v182
        %v261 = vunpack.c.l.b16 %v183
        %v262 = vunpack.c.h.b16 %v183
        %v263 = vunpack.c.l.b16 %v184
        %v264 = vunpack.c.h.b16 %v184
        %v265 = vunpack.c.l.b16 %v185
        %v266 = vunpack.c.h.b16 %v185
        %v267 = vunpack.c.l.b16 %v186
        %v268 = vunpack.c.h.b16 %v186
        %v269 = vunpack.c.l.b16 %v187
        %v270 = vunpack.c.h.b16 %v187
        %v271 = vunpack.c.l.b16 %v188
        %v272 = vunpack.c.h.b16 %v188
        %v273 = vunpack.c.l.b16 %v189
        %v274 = vunpack.c.h.b16 %v189
        %v275 = vunpack.c.l.b16 %v190
        %v276 = vunpack.c.h.b16 %v190
        %v277 = vunpack.c.l.b16 %v191
        %v278 = vunpack.c.h.b16 %v191
        %v279 = vunpack.c.l.b16 %v192
        %v280 = vunpack.c.h.b16 %v192
        %v281 = vunpack.c.l.b16 %v193
        %v282 = vunpack.c.h.b16 %v193
        %v283 = vunpack.c.l.b16 %v194
        %v284 = vunpack.c.h.b16 %v194
        %v285 = vunpack.c.l.b16 %v195
        %v286 = vunpack.c.h.b16 %v195
        %v287 = vunpack.c.l.b16 %v196
        %v288 = vunpack.c.h.b16 %v196
        %v289 = vunpack.c.l.b16 %v197
        %v290 = vunpack.c.h.b16 %v197
        %v291 = vunpack.c.l.b16 %v198
        %v292 = vunpack.c.h.b16 %v198
        %v293 = vunpack.c.l.b16 %v199
        %v294 = vunpack.c.h.b16 %v199
        %v295 = vunpack.c.l.b16 %v200
        %v296 = vunpack.c.h.b16 %v200
        %v297 = vpack.c.b16 %v237, %v233
        %v298 = vpack.c.b16 %v238, %v234
        %v299 = vpack.c.b16 %v239, %v235
        %v300 = vpack.c.b16 %v240, %v236
        %v301 = vpack.c.b16 %v245, %v241
        %v302 = vpack.c.b16 %v246, %v242
        %v303 = vpack.c.b16 %v247, %v243
        %v304 = vpack.c.b16 %v248, %v244
        %v305 = vpack.c.b16 %v253, %v249
        %v306 = vpack.c.b16 %v254, %v250
        %v307 = vpack.c.b16 %v255, %v251
        %v308 = vpack.c.b16 %v256, %v252
        %v309 = vpack.c.b16 %v261, %v257
        %v310 = vpack.c.b16 %v262, %v258
        %v311 = vpack.c.b16 %v263, %v259
        %v312 = vpack.c.b16 %v264, %v260
        %v313 = vpack.c.b16 %v269, %v265
        %v314 = vpack.c.b16 %v270, %v266
        %v315 = vpack.c.b16 %v271, %v267
        %v316 = vpack.c.b16 %v272, %v268
        %v317 = vpack.c.b16 %v277, %v273
        %v318 = vpack.c.b16 %v278, %v274
        %v319 = vpack.c.b16 %v279, %v275
        %v320 = vpack.c.b16 %v280, %v276
        %v321 = vpack.c.b16 %v285, %v281
        %v322 = vpack.c.b16 %v286, %v282
        %v323 = vpack.c.b16 %v287, %v283
        %v324 = vpack.c.b16 %v288, %v284
        %v325 = vpack.c.b16 %v293, %v289
        %v326 = vpack.c.b16 %v294, %v290
        %v327 = vpack.c.b16 %v295, %v291
        %v328 = vpack.c.b16 %v296, %v292
        %361 = vmatprep.subr.bf16.mxu0 %v326
        %362 = vmatpush1.bf16.msra.mxu0 %v325
        %363 = vmatprep.subr.bf16.mxu0 %v322
        %364 = vmatpush1.bf16.msra.mxu0 %v321
        %365 = vmatprep.subr.bf16.mxu0 %v318
        %366 = vmatpush1.bf16.msra.mxu0 %v317
        %367 = vmatprep.subr.bf16.mxu0 %v314
        %368 = vmatpush1.bf16.msra.mxu0 %v313
        %369 = vmatprep.subr.bf16.mxu0 %v310
        %370 = vmatpush1.bf16.msra.mxu0 %v309
        %371 = vmatprep.subr.bf16.mxu0 %v306
        %372 = vmatpush1.bf16.msra.mxu0 %v305
        %373 = vmatprep.subr.bf16.mxu0 %v302
        %374 = vmatpush1.bf16.msra.mxu0 %v301
        %375 = vmatprep.subr.bf16.mxu0 %v298
        %376 = vmatpush1.bf16.msra.mxu0 %v297
        %377 = vmatprep.subr.bf16.mxu0 0
        %378 = vmatpush2.bf16.msra.mxu0 0
        %379 = vmatprep.subr.bf16.mxu0 0
        %380 = vmatpush2.bf16.msra.mxu0 0
        %381 = vmatprep.subr.bf16.mxu0 0
        %382 = vmatpush2.bf16.msra.mxu0 0
        %383 = vmatprep.subr.bf16.mxu0 0
        %384 = vmatpush2.bf16.msra.mxu0 0
        %385 = vmatprep.subr.bf16.mxu0 0
        %386 = vmatpush2.bf16.msra.mxu0 0
        %387 = vmatprep.subr.bf16.mxu0 0
        %388 = vmatpush2.bf16.msra.mxu0 0
        %389 = vmatprep.subr.bf16.mxu0 0
        %390 = vmatpush2.bf16.msra.mxu0 0
        %391 = vmatprep.subr.bf16.mxu0 0
        %392 = vmatpush2.bf16.msra.mxu0 0
        %393 = vmatprep.mubr.bf16.mxu0 0
        %394 = vmatmul.mubr.bf16.gmra.mxu0 %v168
        %v395 = vpop.f32.mrf.mxu0
        %v396 = vadd.f32 0.0, %v395
        %v397 = vpop.f32.mrf.mxu0
        %v398 = vadd.f32 0.0, %v397
        %v399 = vpop.f32.mrf.mxu0
        %v400 = vpop.f32.mrf.mxu0
        %401 = vdwg.mxu0
        %402 = vmatprep.subr.bf16.mxu0 %v328
        %403 = vmatpush1.bf16.msra.mxu0 %v327
        %404 = vmatprep.subr.bf16.mxu0 %v324
        %405 = vmatpush1.bf16.msra.mxu0 %v323
        %406 = vmatprep.subr.bf16.mxu0 %v320
        %407 = vmatpush1.bf16.msra.mxu0 %v319
        %408 = vmatprep.subr.bf16.mxu0 %v316
        %409 = vmatpush1.bf16.msra.mxu0 %v315
        %410 = vmatprep.subr.bf16.mxu0 %v312
        %411 = vmatpush1.bf16.msra.mxu0 %v311
        %412 = vmatprep.subr.bf16.mxu0 %v308
        %413 = vmatpush1.bf16.msra.mxu0 %v307
        %414 = vmatprep.subr.bf16.mxu0 %v304
        %415 = vmatpush1.bf16.msra.mxu0 %v303
        %416 = vmatprep.subr.bf16.mxu0 %v300
        %417 = vmatpush1.bf16.msra.mxu0 %v299
        %418 = vmatprep.subr.bf16.mxu0 0
        %419 = vmatpush2.bf16.msra.mxu0 0
        %420 = vmatprep.subr.bf16.mxu0 0
        %421 = vmatpush2.bf16.msra.mxu0 0
        %422 = vmatprep.subr.bf16.mxu0 0
        %423 = vmatpush2.bf16.msra.mxu0 0
        %424 = vmatprep.subr.bf16.mxu0 0
        %425 = vmatpush2.bf16.msra.mxu0 0
        %426 = vmatprep.subr.bf16.mxu0 0
        %427 = vmatpush2.bf16.msra.mxu0 0
        %428 = vmatprep.subr.bf16.mxu0 0
        %429 = vmatpush2.bf16.msra.mxu0 0
        %430 = vmatprep.subr.bf16.mxu0 0
        %431 = vmatpush2.bf16.msra.mxu0 0
        %432 = vmatprep.subr.bf16.mxu0 0
        %433 = vmatpush2.bf16.msra.mxu0 0
        %434 = vmatprep.mubr.bf16.mxu0 0
        %435 = vmatmul.mubr.bf16.gmra.mxu0 %v168
        %v436 = vpop.f32.mrf.mxu0
        %v437 = vadd.f32 0.0, %v436
        %v438 = vpop.f32.mrf.mxu0
        %v439 = vadd.f32 0.0, %v438
        %v440 = vpop.f32.mrf.mxu0
        %v441 = vpop.f32.mrf.mxu0
        %442 = vdwg.mxu0
        %v443 = vxor.u32 %v396, 2147483648
        %v444 = vxor.u32 %v398, 2147483648
        %v445 = vmul.f32 %v443, 1.442695
        %v446 = vpow.pop %v445
        %v447 = vmul.f32 %v444, 1.442695
        %v448 = vpow.pop %v447
        %v449 = vadd.f32 %v446, 1.0
        %v450 = vadd.f32 %v448, 1.0
        %v451 = vrcp.pop %v449
        %v452 = vmul.f32 1.0, %v451
        %v453 = vrcp.pop %v450
        %v454 = vmul.f32 1.0, %v453
        %v455 = vmul.f32 %v396, %v452
        %v456 = vmul.f32 %v398, %v454
        %v457 = vmul.f32 %v455, %v437
        %v458 = vmul.f32 %v456, %v439
        %v459 = vpack.c.bf16 %v457, %v457
        %v460 = vpack.c.bf16 %v458, %v458
        %v461 = vld [vmem:[%s2] sm:$0xf]
        %v462 = vld [vmem:[%s2 + $0x4] sm:$0xf]
        %v463 = vld [vmem:[%s2 + $0x8] sm:$0xf]
        %v464 = vld [vmem:[%s2 + $0xc] sm:$0xf]
        %v465 = vld [vmem:[%s2 + $0x10] sm:$0xf]
        %v466 = vld [vmem:[%s2 + $0x14] sm:$0xf]
        %v467 = vld [vmem:[%s2 + $0x18] sm:$0xf]
        %v468 = vld [vmem:[%s2 + $0x1c] sm:$0xf]
        %v469 = vld [vmem:[%s2 + $0x20] sm:$0xf]
        %v470 = vld [vmem:[%s2 + $0x24] sm:$0xf]
        %v471 = vld [vmem:[%s2 + $0x28] sm:$0xf]
        %v472 = vld [vmem:[%s2 + $0x2c] sm:$0xf]
        %v473 = vld [vmem:[%s2 + $0x30] sm:$0xf]
        %v474 = vld [vmem:[%s2 + $0x34] sm:$0xf]
        %v475 = vld [vmem:[%s2 + $0x38] sm:$0xf]
        %v476 = vld [vmem:[%s2 + $0x3c] sm:$0xf]
        %v477 = vld [vmem:[%s2 + $0x40] sm:$0xf]
        %v478 = vld [vmem:[%s2 + $0x44] sm:$0xf]
        %v479 = vld [vmem:[%s2 + $0x48] sm:$0xf]
        %v480 = vld [vmem:[%s2 + $0x4c] sm:$0xf]
        %v481 = vld [vmem:[%s2 + $0x50] sm:$0xf]
        %v482 = vld [vmem:[%s2 + $0x54] sm:$0xf]
        %v483 = vld [vmem:[%s2 + $0x58] sm:$0xf]
        %v484 = vld [vmem:[%s2 + $0x5c] sm:$0xf]
        %v485 = vld [vmem:[%s2 + $0x60] sm:$0xf]
        %v486 = vld [vmem:[%s2 + $0x64] sm:$0xf]
        %v487 = vld [vmem:[%s2 + $0x68] sm:$0xf]
        %v488 = vld [vmem:[%s2 + $0x6c] sm:$0xf]
        %v489 = vld [vmem:[%s2 + $0x70] sm:$0xf]
        %v490 = vld [vmem:[%s2 + $0x74] sm:$0xf]
        %v491 = vld [vmem:[%s2 + $0x78] sm:$0xf]
        %v492 = vld [vmem:[%s2 + $0x7c] sm:$0xf]
        %v525 = vunpack.c.l.b16 %v461
        %v526 = vunpack.c.l.b16 %v462
        %v527 = vunpack.c.l.b16 %v463
        %v528 = vunpack.c.l.b16 %v464
        %v529 = vunpack.c.l.b16 %v465
        %v530 = vunpack.c.l.b16 %v466
        %v531 = vunpack.c.l.b16 %v467
        %v532 = vunpack.c.l.b16 %v468
        %v533 = vunpack.c.l.b16 %v469
        %v534 = vunpack.c.l.b16 %v470
        %v535 = vunpack.c.l.b16 %v471
        %v536 = vunpack.c.l.b16 %v472
        %v537 = vunpack.c.l.b16 %v473
        %v538 = vunpack.c.l.b16 %v474
        %v539 = vunpack.c.l.b16 %v475
        %v540 = vunpack.c.l.b16 %v476
        %v541 = vunpack.c.l.b16 %v477
        %v542 = vunpack.c.l.b16 %v478
        %v543 = vunpack.c.l.b16 %v479
        %v544 = vunpack.c.l.b16 %v480
        %v545 = vunpack.c.l.b16 %v481
        %v546 = vunpack.c.l.b16 %v482
        %v547 = vunpack.c.l.b16 %v483
        %v548 = vunpack.c.l.b16 %v484
        %v549 = vunpack.c.l.b16 %v485
        %v550 = vunpack.c.l.b16 %v486
        %v551 = vunpack.c.l.b16 %v487
        %v552 = vunpack.c.l.b16 %v488
        %v553 = vunpack.c.l.b16 %v489
        %v554 = vunpack.c.l.b16 %v490
        %v555 = vunpack.c.l.b16 %v491
        %v556 = vunpack.c.l.b16 %v492
        %v557 = vpack.c.b16 %v526, %v525
        %v558 = vpack.c.b16 %v528, %v527
        %v559 = vpack.c.b16 %v530, %v529
        %v560 = vpack.c.b16 %v532, %v531
        %v561 = vpack.c.b16 %v534, %v533
        %v562 = vpack.c.b16 %v536, %v535
        %v563 = vpack.c.b16 %v538, %v537
        %v564 = vpack.c.b16 %v540, %v539
        %v565 = vpack.c.b16 %v542, %v541
        %v566 = vpack.c.b16 %v544, %v543
        %v567 = vpack.c.b16 %v546, %v545
        %v568 = vpack.c.b16 %v548, %v547
        %v569 = vpack.c.b16 %v550, %v549
        %v570 = vpack.c.b16 %v552, %v551
        %v571 = vpack.c.b16 %v554, %v553
        %v572 = vpack.c.b16 %v556, %v555
        %589 = vmatprep.subr.bf16.mxu0 0
        %590 = vmatpush1.bf16.msra.mxu0 %v564
        %591 = vmatprep.subr.bf16.mxu0 0
        %592 = vmatpush1.bf16.msra.mxu0 %v563
        %593 = vmatprep.subr.bf16.mxu0 0
        %594 = vmatpush1.bf16.msra.mxu0 %v562
        %595 = vmatprep.subr.bf16.mxu0 0
        %596 = vmatpush1.bf16.msra.mxu0 %v561
        %597 = vmatprep.subr.bf16.mxu0 0
        %598 = vmatpush1.bf16.msra.mxu0 %v560
        %599 = vmatprep.subr.bf16.mxu0 0
        %600 = vmatpush1.bf16.msra.mxu0 %v559
        %601 = vmatprep.subr.bf16.mxu0 0
        %602 = vmatpush1.bf16.msra.mxu0 %v558
        %603 = vmatprep.subr.bf16.mxu0 0
        %604 = vmatpush1.bf16.msra.mxu0 %v557
        %605 = vmatprep.subr.bf16.mxu0 0
        %606 = vmatpush2.bf16.msra.mxu0 %v572
        %607 = vmatprep.subr.bf16.mxu0 0
        %608 = vmatpush2.bf16.msra.mxu0 %v571
        %609 = vmatprep.subr.bf16.mxu0 0
        %610 = vmatpush2.bf16.msra.mxu0 %v570
        %611 = vmatprep.subr.bf16.mxu0 0
        %612 = vmatpush2.bf16.msra.mxu0 %v569
        %613 = vmatprep.subr.bf16.mxu0 0
        %614 = vmatpush2.bf16.msra.mxu0 %v568
        %615 = vmatprep.subr.bf16.mxu0 0
        %616 = vmatpush2.bf16.msra.mxu0 %v567
        %617 = vmatprep.subr.bf16.mxu0 0
        %618 = vmatpush2.bf16.msra.mxu0 %v566
        %619 = vmatprep.subr.bf16.mxu0 0
        %620 = vmatpush2.bf16.msra.mxu0 %v565
        %621 = vmatprep.mubr.bf16.mxu0 %v460
        %622 = vmatmul.mubr.bf16.gmra.mxu0 %v459
        %v623 = vpop.f32.mrf.mxu0
        %v624 = vadd.f32 0.0, %v623
        %v625 = vpop.f32.mrf.mxu0
        %v626 = vpop.f32.mrf.mxu0
        %v627 = vpop.f32.mrf.mxu0
        %628 = vdwg.mxu0
        %629 = vst [vmem:[%s161] sm:$0xff] %v624
        %s630 = sand.u32 %s93, 1
        %s631 = scalar_lea.sflag [#allocation3], %s630
        %s632 = sand.u32 %s93, 1
        %s633 = smul.addr %s632, 8
        %s634 = scalar_lea.vmem [#allocation2], %s633
        // Predicated region
        $region33: #{smollm2_mlp.1} parent=31 // pred_check
          %p635 = pneg %p103
        $region34: #{smollm2_mlp.1} parent=31 // pred_check_branch
          %637 = sbr.rel (%p635) target = $region36
        $region35: #{smollm2_mlp.1} parent=31 // pred_region
          %s639 = ssub.s32 128, 128
          %640 = vsyncadd %s631, %s639
          %s641 = smul.addr %s17, 128
          %s642 = scalar_lea.hbm %s3, %s641
          %s644 = sshll.u32 %s634, 4
          %s645 = int_to_ptr.vmem [resolvable:$true] %s644
          %647 = dma.vmem_to_hbm [thread:$0]  %s645, 128, %s642, %s631
        $region36: #{smollm2_mlp.1} parent=31 // pred_fallthru
          _
      $region32: #{smollm2_mlp.1} parent=5 // pred_fallthru
        _
      %p648 = scmp.le.s32.totalorder 2, %s12
      // Predicated region
      $region37: #{smollm2_mlp.1} parent=5 // pred_check
        %p649 = pneg %p648
      $region38: #{smollm2_mlp.1} parent=5 // pred_check_branch
        %651 = sbr.rel (%p649) target = $region40
      $region39: #{smollm2_mlp.1} parent=5 // pred_region
        %s652 = ssub.s32 %s12, 2
        // Predicated region
        $region41: #{smollm2_mlp.1} parent=39 // pred_check
          %p653 = pneg %p109
        $region42: #{smollm2_mlp.1} parent=39 // pred_check_branch
          %655 = sbr.rel (%p653) target = $region44
        $region43: #{smollm2_mlp.1} parent=39 // pred_region
          %s656 = sand.u32 %s94, 1
          %s657 = scalar_lea.sflag [#allocation3], %s656
          %s658 = sand.u32 %s94, 1
          %s659 = smul.addr %s658, 8
          %s660 = scalar_lea.vmem [#allocation2], %s659
          %661 = dma.done %s657, 128
        $region44: #{smollm2_mlp.1} parent=39 // pred_fallthru
          _
      $region40: #{smollm2_mlp.1} parent=5 // pred_fallthru
        _
    $region6: #{smollm2_mlp.1} parent=1 // loop_footer
      %s16 = sadd.s32 1, %s12
    $region7: #{smollm2_mlp.1} parent=1 // loop_footer_branch
      %11 = sbr.rel target = $region3
    $region8: #{smollm2_mlp.1} parent=1 // loop_exit
      _
    %662 = vsyncpa [#allocation3], 1
    %s663 = scalar_lea.sflag [#allocation3], 1
    %664 = vsyncpa %s663, 1

</llo_original>
